<compile_context>
chip_gen: v5e
topology: v5e:2x2
jax: 0.10.0
libtpu: 0.0.40
codegen_flags: <defaults>
</compile_context>

<pallas_src>
import functools

import jax
import jax.numpy as jnp
from jax.experimental import pallas as pl
from jax.experimental.pallas import tpu as pltpu

_LANE = 128                       # pad feature dims to full lane width
_VMEM_LIMIT = 32 * 1024 * 1024    # explicit scoped-VMEM cap (safe on v5e/v6e/v7x)


def _round_up(v, m):
    return (v + m - 1) // m * m


def _choose_tile(n):
    """Adjacency tile edge; keeps 2x(T*T bf16) buffers + XW + acc well under VMEM."""
    if n >= 2048:
        return 512
    if n >= 512:
        return 256
    return 128


# ---------------------------------------------------------------------------
# Pallas kernels
# ---------------------------------------------------------------------------
def _xw_kernel(x_ref, w_ref, o_ref):
    """XW tile = X_tile @ W  (f32 accumulation, bf16 store)."""
    o_ref[...] = jnp.dot(
        x_ref[...], w_ref[...], preferred_element_type=jnp.float32
    ).astype(o_ref.dtype)


def xw_matmul(x, w, tile):
    n_pad, f_in = x.shape
    f_out = w.shape[1]
    return pl.pallas_call(
        _xw_kernel,
        out_shape=jax.ShapeDtypeStruct((n_pad, f_out), jnp.bfloat16),
        grid=(n_pad // tile,),
        in_specs=[
            pl.BlockSpec((tile, f_in), lambda i: (i, 0)),
            pl.BlockSpec((f_in, f_out), lambda i: (0, 0)),   # W resident
        ],
        out_specs=pl.BlockSpec((tile, f_out), lambda i: (i, 0)),
        compiler_params=pltpu.CompilerParams(
            dimension_semantics=("parallel",),
            vmem_limit_bytes=_VMEM_LIMIT,
        ),
    )(x, w)


def _aggregate_kernel(adj_ref, xw_ref, b_ref, o_ref, acc_ref, *, apply_relu):
    """acc += A_tile @ XW_tile ; on last K step: out = acc + b (optional ReLU)."""
    k = pl.program_id(1)

    @pl.when(k == 0)
    def _():
        acc_ref[...] = jnp.zeros_like(acc_ref)

    acc_ref[...] += jnp.dot(
        adj_ref[...], xw_ref[...], preferred_element_type=jnp.float32
    )

    @pl.when(k == pl.num_programs(1) - 1)
    def _():
        out = acc_ref[...] + b_ref[...]
        if apply_relu:
            out = jnp.maximum(out, 0.0)
        o_ref[...] = out.astype(o_ref.dtype)


def gcn_aggregate(adj, xw, b, tile, apply_relu):
    n_pad = adj.shape[0]
    f_out = xw.shape[1]
    kernel = functools.partial(_aggregate_kernel, apply_relu=apply_relu)
    cost = pl.CostEstimate(
        flops=2 * n_pad * n_pad * f_out,
        transcendentals=0,
        bytes_accessed=n_pad * n_pad * 2 + n_pad * f_out * 2 + n_pad * f_out * 4,
    )
    return pl.pallas_call(
        kernel,
        out_shape=jax.ShapeDtypeStruct((n_pad, f_out), jnp.float32),
        grid_spec=pltpu.PrefetchScalarGridSpec(
            num_scalar_prefetch=0,
            grid=(n_pad // tile, n_pad // tile),            # (row tiles, K tiles)
            in_specs=[
                pl.BlockSpec((tile, tile), lambda i, k: (i, k)),    # A_hat (bf16)
                pl.BlockSpec((tile, f_out), lambda i, k: (k, 0)),   # XW    (bf16)
                pl.BlockSpec((1, f_out), lambda i, k: (0, 0)),      # bias  (f32)
            ],
            out_specs=pl.BlockSpec((tile, f_out), lambda i, k: (i, 0)),
            scratch_shapes=[pltpu.VMEM((tile, f_out), jnp.float32)],
        ),
        compiler_params=pltpu.CompilerParams(
            dimension_semantics=("parallel", "arbitrary"),
            vmem_limit_bytes=_VMEM_LIMIT,
        ),
        cost_estimate=cost,
    )(adj, xw, b)


def _linear_kernel(x_ref, w_ref, b_ref, o_ref):
    o_ref[...] = (
        jnp.dot(x_ref[...], w_ref[...], preferred_element_type=jnp.float32)
        + b_ref[...]
    ).astype(o_ref.dtype)


def _full_spec(shape):
    return pl.BlockSpec(shape, lambda: tuple(0 for _ in shape))


def linear(x, w, b):
    g = x.shape[0]
    c = w.shape[1]
    return pl.pallas_call(
        _linear_kernel,
        out_shape=jax.ShapeDtypeStruct((g, c), jnp.float32),
        grid=(),
        in_specs=[_full_spec(x.shape), _full_spec(w.shape), _full_spec(b.shape)],
        out_specs=_full_spec((g, c)),
    )(x, w, b)


# ---------------------------------------------------------------------------
# Plain-JAX glue (no heavy compute)
# ---------------------------------------------------------------------------
def build_normalized_adjacency(edge_index, edge_weight, num_nodes):
    """A_hat = D^-1/2 (A + I) D^-1/2, matching PyG GCNConv defaults."""
    src, dst = edge_index[0], edge_index[1]
    adj = jnp.zeros((num_nodes, num_nodes), jnp.float32)
    adj = adj.at[dst, src].add(edge_weight.astype(jnp.float32))   # msg src(j)->dst(i)
    adj = adj + jnp.eye(num_nodes, dtype=jnp.float32)             # add_self_loops
    deg = jnp.sum(adj, axis=1)
    d_inv_sqrt = jnp.where(deg > 0, 1.0 / jnp.sqrt(deg), 0.0)
    return d_inv_sqrt[:, None] * adj * d_inv_sqrt[None, :]


def segment_mean_pool(h, batch, num_graphs):
    sums = jax.ops.segment_sum(h, batch, num_segments=num_graphs)
    counts = jax.ops.segment_sum(
        jnp.ones((h.shape[0],), jnp.float32), batch, num_segments=num_graphs
    )
    return sums / jnp.maximum(counts, 1.0)[:, None]


# ---------------------------------------------------------------------------
# GCN forward
# ---------------------------------------------------------------------------
def gcn_forward(params, x, edge_index, edge_weight, batch, num_graphs, size):
    n, f_in = x.shape
    tile = _choose_tile(n)
    n_pad = _round_up(max(n, tile), tile)
    f_in_pad = _round_up(f_in, _LANE)

    adj = build_normalized_adjacency(edge_index, edge_weight, n)
    adj_pad = (
        jnp.zeros((n_pad, n_pad), jnp.bfloat16)
        .at[:n, :n].set(adj.astype(jnp.bfloat16))          # bf16 A_hat (values in [0,1])
    )

    h = (
        jnp.zeros((n_pad, f_in_pad), jnp.float32)
        .at[:n, :f_in].set(x.astype(jnp.float32))
    )

    for i in range(size):
        w, b = params["convs"][i]
        xw = xw_matmul(h, w, tile)                          # [n_pad, 128] bf16, reused for all A tiles
        h = gcn_aggregate(adj_pad, xw, b, tile, apply_relu=(i < size - 1))

    pooled = segment_mean_pool(h[:n], batch, num_graphs)    # [G, 128] (padded lanes are 0)
    # dropout: inference mode -> identity
    w_lin, b_lin = params["lin"]
    return linear(pooled, w_lin, b_lin)


def init_params(key, num_node_features, hidden_channels, num_classes, size):
    """Glorot-like init as in PyG; weights zero-padded to 128-lane shapes."""
    f_pad = _round_up(hidden_channels, _LANE)
    params = {"convs": [], "lin": None}
    dims_in = [num_node_features] + [hidden_channels] * (size - 1)
    for i in range(size):
        key, k_w = jax.random.split(key)
        fan_in, fan_out = dims_in[i], hidden_channels
        fan_in_pad = _round_up(fan_in, _LANE)
        scale = jnp.sqrt(6.0 / (fan_in + fan_out))
        w = jax.random.uniform(k_w, (fan_in, fan_out), jnp.float32, -scale, scale)
        w_pad = jnp.zeros((fan_in_pad, f_pad), jnp.float32).at[:fan_in, :fan_out].set(w)
        b_pad = jnp.zeros((1, f_pad), jnp.float32)
        params["convs"].append((w_pad, b_pad))
    key, k_lw, k_lb = jax.random.split(key, 3)
    bound = 1.0 / jnp.sqrt(hidden_channels)
    w_lin = jax.random.uniform(
        k_lw, (hidden_channels, num_classes), jnp.float32, -bound, bound
    )
    w_lin_pad = jnp.zeros((f_pad, num_classes), jnp.float32).at[:hidden_channels].set(w_lin)
    b_lin = jax.random.uniform(k_lb, (1, num_classes), jnp.float32, -bound, bound)
    params["lin"] = (w_lin_pad, b_lin)
    return params


# ---------------------------------------------------------------------------
if __name__ == "__main__":
    # model config
    hidden_channels = 32
    num_node_features = 8
    num_classes = 4
    size = 2            # number of GCNConv layers
    dropout = 0.5       # inference -> identity

    # synthetic batch: 4 graphs x 128 nodes -> exercises a (2, 2) tile grid at tile=256
    num_nodes = 512
    num_graphs = 4
    nodes_per_graph = num_nodes // num_graphs
    num_edges = 2048

    key = jax.random.PRNGKey(0)
    key, kx, ke_src, ke_dst, kw = jax.random.split(key, 5)

    x = jax.random.normal(kx, (num_nodes, num_node_features), jnp.float32)
    src = jax.random.randint(ke_src, (num_edges,), 0, num_nodes, jnp.int32)
    dst = jax.random.randint(ke_dst, (num_edges,), 0, num_nodes, jnp.int32)
    edge_index = jnp.stack([src, dst], axis=0)                        # [2, E]
    edge_weight = jax.random.uniform(kw, (num_edges,), jnp.float32, 0.1, 1.0)
    batch = jnp.repeat(jnp.arange(num_graphs, dtype=jnp.int32), nodes_per_graph)

    params = init_params(
        jax.random.PRNGKey(12345), num_node_features, hidden_channels, num_classes, size
    )

    out = gcn_forward(params, x, edge_index, edge_weight, batch, num_graphs, size)
    out = jax.block_until_ready(out)
    assert out.shape == (num_graphs, num_classes)
    print("KERNEL_OK")
</pallas_src>

<mosaic_0001>
module attributes {stable_mosaic.version = 11 : i64} {
  func.func @_xw_kernel(%arg0: i32, %arg1: memref<256x128xf32, #tpu.memory_space<vmem>>, %arg2: memref<128x128xf32, #tpu.memory_space<vmem>>, %arg3: memref<256x128xbf16, #tpu.memory_space<vmem>>) attributes {dimension_semantics = [#tpu.dimension_semantics<parallel>], iteration_bounds = array<i64: 2>, scalar_prefetch = 0 : i64, scratch_operands = 0 : i64, tpu.core_type = #tpu.core_type<tc>, window_params = [{transform_indices = @transform_0, window_bounds = array<i64: 256, 128>}, {pipeline_mode = #tpu.pipeline_mode<synchronous>, transform_indices = @transform_1, window_bounds = array<i64: 128, 128>}, {transform_indices = @transform_2, window_bounds = array<i64: 256, 128>}]} {
    %c0 = arith.constant 0 : index
    %c0_0 = arith.constant 0 : index
    %0 = vector.load %arg1[%c0, %c0_0] : memref<256x128xf32, #tpu.memory_space<vmem>>, vector<256x128xf32>
    %c0_1 = arith.constant 0 : index
    %c0_2 = arith.constant 0 : index
    %1 = vector.load %arg2[%c0_1, %c0_2] : memref<128x128xf32, #tpu.memory_space<vmem>>, vector<128x128xf32>
    %cst = arith.constant dense<0.000000e+00> : vector<256x128xf32>
    %2 = tpu.matmul %0, %1, %cst {dimension_numbers = #tpu.dot_dimension_numbers<[1], [0], [0], [1], [0, 0, 1, 1], [], []>} : vector<256x128xf32>, vector<128x128xf32>, vector<256x128xf32> -> vector<256x128xf32>
    %3 = arith.truncf %2 : vector<256x128xf32> to vector<256x128xbf16>
    %c0_3 = arith.constant 0 : index
    %c0_4 = arith.constant 0 : index
    %4 = vector.load %arg3[%c0_3, %c0_4] : memref<256x128xbf16, #tpu.memory_space<vmem>>, vector<256x128xbf16>
    tpu.vector_store %arg3[%c0_3, %c0_4], %3 {strides = array<i32>} : memref<256x128xbf16, #tpu.memory_space<vmem>>, vector<256x128xbf16>,
    return
  }
  func.func @transform_0(%arg0: i32) -> (i32, i32) {
    %c0_i32 = arith.constant 0 : i32
    %c0_i32_0 = arith.constant 0 : i32
    return %arg0, %c0_i32 : i32, i32
  }
  func.func @transform_1(%arg0: i32) -> (i32, i32) {
    %c0_i32 = arith.constant 0 : i32
    %c0_i32_0 = arith.constant 0 : i32
    %c0_i32_1 = arith.constant 0 : i32
    return %c0_i32, %c0_i32_0 : i32, i32
  }
  func.func @transform_2(%arg0: i32) -> (i32, i32) {
    %c0_i32 = arith.constant 0 : i32
    %c0_i32_0 = arith.constant 0 : i32
    return %arg0, %c0_i32 : i32, i32
  }
}

</mosaic_0001>

<llo_original>
// kernel: tpu_custom_call.1
$region0: #{tpu_custom_call.1}
  #allocation0 [shape = 'u32[]', space=smem, size = 0x4, offset = 0x4, fixed_abs, tag = 'smem constant byte address 0x4 - core index']
  #allocation1 [shape = 'u32[72,128]{1,0:T(1,128)}', space=vmem, size = 0x9000, scoped, tag = 'internal scratch']
  %s0 = inlined_call_operand.hbm [shape: f32[512,128], index: 0, kind: input, shape index: {}]
  %s1 = inlined_call_operand.hbm [shape: f32[128,128], index: 1, kind: input, shape index: {}]
  %s2 = inlined_call_operand.hbm [shape: bf16[512,128], index: 2, kind: output, shape index: {}]
  %s3 = sld [smem:[#allocation0]]
  $region49: #{tpu_custom_call.1} parent=0
    _
  %s5 = ssub.s32 1, %s3
  %s6 = scalar_select 0, %s5, %s3
  $region1: #{tpu_custom_call.1} parent=0
    #allocation2 [shape = 'u8[262144]{0}', space=vmem, size = 0x40000, scoped, tag = 'input window, operand 0']
    #allocation3 [shape = 's32[2]{0}', space=sflag, size = 0x8, scoped, tag = 'scoped memory for tpu_custom_call.1']
    #allocation4 [shape = 's32[2]{0}', space=sflag, size = 0x8, scoped, tag = 'scoped memory for tpu_custom_call.1']
    #allocation5 [shape = 'u8[65536]{0}', space=vmem, size = 0x10000, scoped, tag = 'input window, operand 1, single buffered']
    #allocation6 [shape = 's32[1]{0}', space=sflag, size = 0x4, scoped, tag = 'scoped memory for tpu_custom_call.1']
    #allocation7 [shape = 'u8[131072]{0}', space=vmem, size = 0x20000, scoped, tag = 'output window, operand 0']
    %7 = vsyncpa [#allocation3], 0
    %s8 = scalar_lea.sflag [#allocation3], 1
    %9 = vsyncpa %s8, 0
    %10 = vsyncpa [#allocation6], 0
    %11 = vsyncpa [#allocation4], 0
    %s12 = scalar_lea.sflag [#allocation4], 1
    %13 = vsyncpa %s12, 0
    loop: start=0, step=1, limit=4
    $region2: #{tpu_custom_call.1} parent=1 // loop_pre_header
      _
    $region3: #{tpu_custom_call.1} parent=1 // loop_header
      %s15 = sphi 0, %s19
      %p16 = scmp.ge.s32.totalorder %s15, 4
      %s25 = sphi 0, %s27
      %s28 = sphi 0, %s25
      %s29 = sphi 0, %s28
      %s45 = sphi 0, %s29
      %s49 = sphi 0, %s49
      %s51 = sphi 0, %s49
      %s52 = sphi 0, %s51
      %s66 = sphi 0, %s52
      %s72 = sphi 0, %s74
      %s75 = sphi 0, %s72
      %s76 = sphi 0, %s75
      %s92 = sphi 0, %s76
    $region4: #{tpu_custom_call.1} parent=1 // loop_header_branch
      %18 = sbr.rel (%p16) target = $region8
    $region5: #{tpu_custom_call.1} parent=1 // loop_body
      %s20 = ssub.s32 %s15, 1
      %s21 = ssub.s32 %s15, 2
      %s22 = sadd.s32 %s15, 1
      %s23 = ssub.s32 %s15, %s22
      %p24 = scmp.eq.s32.totalorder %s23, 0
      %s26 = sadd.s32 %s25, 1
      %s27 = scalar_select %p24, %s25, %s26
      %p30 = pneg %p24
      %p31 = scmp.eq.s32.totalorder %s15, 1
      %p32 = por %p30, %p31
      %p33 = scmp.ne.s32.totalorder %s25, %s28
      %p34 = scmp.eq.s32.totalorder %s15, 0
      %p35 = por %p33, %p34
      %p36 = scmp.ne.s32.totalorder %s25, %s28
      %p37 = scmp.eq.s32.totalorder %s20, 1
      %p38 = por %p36, %p37
      %p39 = scmp.ne.s32.totalorder %s28, %s29
      %p40 = scmp.eq.s32.totalorder %s20, 0
      %p41 = por %p39, %p40
      %p42 = scmp.ne.s32.totalorder %s28, %s29
      %p43 = scmp.eq.s32.totalorder %s21, 1
      %p44 = por %p42, %p43
      %p46 = scmp.ne.s32.totalorder %s29, %s45
      %p47 = scmp.eq.s32.totalorder %s21, 0
      %p48 = por %p46, %p47
      %s50 = sadd.s32 %s49, 1
      %p53 = scmp.eq.s32.totalorder %s15, 1
      %p54 = scmp.ne.s32.totalorder %s49, %s51
      %p55 = scmp.eq.s32.totalorder %s15, 0
      %p56 = por %p54, %p55
      %p57 = scmp.ne.s32.totalorder %s49, %s51
      %p58 = scmp.eq.s32.totalorder %s20, 1
      %p59 = por %p57, %p58
      %p60 = scmp.ne.s32.totalorder %s51, %s52
      %p61 = scmp.eq.s32.totalorder %s20, 0
      %p62 = por %p60, %p61
      %p63 = scmp.ne.s32.totalorder %s51, %s52
      %p64 = scmp.eq.s32.totalorder %s21, 1
      %p65 = por %p63, %p64
      %p67 = scmp.ne.s32.totalorder %s52, %s66
      %p68 = scmp.eq.s32.totalorder %s21, 0
      %p69 = por %p67, %p68
      %s70 = ssub.s32 %s15, %s22
      %p71 = scmp.eq.s32.totalorder %s70, 0
      %s73 = sadd.s32 %s72, 1
      %s74 = scalar_select %p71, %s72, %s73
      %p77 = pneg %p71
      %p78 = scmp.eq.s32.totalorder %s15, 1
      %p79 = por %p77, %p78
      %p80 = scmp.ne.s32.totalorder %s72, %s75
      %p81 = scmp.eq.s32.totalorder %s15, 0
      %p82 = por %p80, %p81
      %p83 = scmp.ne.s32.totalorder %s72, %s75
      %p84 = scmp.eq.s32.totalorder %s20, 1
      %p85 = por %p83, %p84
      %p86 = scmp.ne.s32.totalorder %s75, %s76
      %p87 = scmp.eq.s32.totalorder %s20, 0
      %p88 = por %p86, %p87
      %p89 = scmp.ne.s32.totalorder %s75, %s76
      %p90 = scmp.eq.s32.totalorder %s21, 1
      %p91 = por %p89, %p90
      %p93 = scmp.ne.s32.totalorder %s76, %s92
      %p94 = scmp.eq.s32.totalorder %s21, 0
      %p95 = por %p93, %p94
      %p96 = scmp.le.s32.totalorder 1, %s15
      %p97 = scmp.lt.s32.totalorder %s15, 3
      %p98 = pnand %p96, %p97
      %p99 = pneg %p98
      // Predicated region
      $region9: #{tpu_custom_call.1} parent=5 // pred_check
        _
      $region10: #{tpu_custom_call.1} parent=5 // pred_check_branch
        %101 = sbr.rel (%p98) target = $region12
      $region11: #{tpu_custom_call.1} parent=5 // pred_region
        %s102 = ssub.s32 %s15, 1
        // Predicated region
        $region13: #{tpu_custom_call.1} parent=11 // pred_check
          %p103 = pneg %p62
        $region14: #{tpu_custom_call.1} parent=11 // pred_check_branch
          %105 = sbr.rel (%p103) target = $region16
        $region15: #{tpu_custom_call.1} parent=11 // pred_region
          %107 = vsyncadd [#allocation6], 0
          %s108 = sshll.u32 %s1, 4
          %s109 = int_to_ptr.hbm [resolvable:$true] %s108
          %s110 = sshll.u32 [#allocation5], 4
          %s111 = int_to_ptr.vmem [resolvable:$true] %s110
          %116 = dma.hbm_to_vmem [thread:$0]  %s109, 2048, %s111, [#allocation6], 128, 128, 8
        $region16: #{tpu_custom_call.1} parent=11 // pred_fallthru
          _
      $region12: #{tpu_custom_call.1} parent=5 // pred_fallthru
        _
      %p117 = scmp.lt.s32.totalorder %s15, 2
      // Predicated region
      $region17: #{tpu_custom_call.1} parent=5 // pred_check
        %p118 = pneg %p117
      $region18: #{tpu_custom_call.1} parent=5 // pred_check_branch
        %120 = sbr.rel (%p118) target = $region20
      $region19: #{tpu_custom_call.1} parent=5 // pred_region
        // Predicated region
        $region21: #{tpu_custom_call.1} parent=19 // pred_check
          %p121 = pneg %p35
        $region22: #{tpu_custom_call.1} parent=19 // pred_check_branch
          %123 = sbr.rel (%p121) target = $region24
        $region23: #{tpu_custom_call.1} parent=19 // pred_region
          %s124 = sand.u32 %s25, 1
          %s125 = scalar_lea.sflag [#allocation3], %s124
          %s126 = sand.u32 %s25, 1
          %s127 = smul.addr %s126, 256
          %s128 = scalar_lea.vmem [#allocation2], %s127
          %s129 = smul.u32 32, %s15
          %131 = vsyncadd %s125, 0
          %s132 = smul.addr %s129, 8
          %s133 = scalar_lea.hbm %s0, %s132
          %s134 = sshll.u32 %s133, 4
          %s135 = int_to_ptr.hbm [resolvable:$true] %s134
          %s136 = sshll.u32 %s128, 4
          %s137 = int_to_ptr.vmem [resolvable:$true] %s136
          %142 = dma.hbm_to_vmem [thread:$0]  %s135, 4096, %s137, %s125, 128, 128, 8
        $region24: #{tpu_custom_call.1} parent=19 // pred_fallthru
          _
      $region20: #{tpu_custom_call.1} parent=5 // pred_fallthru
        _
      %p143 = scmp.le.s32.totalorder 1, %s15
      %p144 = scmp.lt.s32.totalorder %s15, 3
      %p145 = pnand %p143, %p144
      %p146 = pneg %p145
      // Predicated region
      $region25: #{tpu_custom_call.1} parent=5 // pred_check
        _
      $region26: #{tpu_custom_call.1} parent=5 // pred_check_branch
        %148 = sbr.rel (%p145) target = $region28
      $region27: #{tpu_custom_call.1} parent=5 // pred_region
        %s149 = ssub.s32 %s15, 1
        %s150 = sand.u32 %s28, 1
        %s151 = scalar_lea.sflag [#allocation3], %s150
        %s152 = sand.u32 %s28, 1
        %s153 = smul.addr %s152, 256
        %s154 = scalar_lea.vmem [#allocation2], %s153
        // Predicated region
        $region29: #{tpu_custom_call.1} parent=27 // pred_check
          %p155 = pneg %p41
        $region30: #{tpu_custom_call.1} parent=27 // pred_check_branch
          %157 = sbr.rel (%p155) target = $region32
        $region31: #{tpu_custom_call.1} parent=27 // pred_region
          %159 = dma.done %s151, 4096
        $region32: #{tpu_custom_call.1} parent=27 // pred_fallthru
          _
        // Predicated region
        $region33: #{tpu_custom_call.1} parent=27 // pred_check
          %p160 = pneg %p62
        $region34: #{tpu_custom_call.1} parent=27 // pred_check_branch
          %162 = sbr.rel (%p160) target = $region36
        $region35: #{tpu_custom_call.1} parent=27 // pred_region
          %164 = dma.done [#allocation6], 2048
        $region36: #{tpu_custom_call.1} parent=27 // pred_fallthru
          _
        %s165 = sand.u32 %s28, 1
        %s166 = scalar_lea.sflag [#allocation3], %s165
        %s167 = sand.u32 %s28, 1
        %s168 = smul.addr %s167, 256
        %s169 = scalar_lea.vmem [#allocation2], %s168
        %p170 = pneg %p41
        %p171 = pneg %p38
        %p172 = pneg %p62
        %p173 = pneg %p59
        %p174 = pneg %p88
        %p175 = pneg %p85
        %s176 = sand.u32 %s75, 1
        %s177 = scalar_lea.sflag [#allocation4], %s176
        %s178 = sand.u32 %s75, 1
        %s179 = smul.addr %s178, 128
        %s180 = scalar_lea.vmem [#allocation7], %s179
        %s181 = smul.u32 32, %s20
        %s182 = smul.u32 32, %s20
        %v183 = vld [vmem:[%s154] sm:$0xff]
        %v184 = vld [vmem:[%s154 + $0x8] sm:$0xff]
        %v185 = vld [vmem:[%s154 + $0x10] sm:$0xff]
        %v186 = vld [vmem:[%s154 + $0x18] sm:$0xff]
        %v187 = vld [vmem:[%s154 + $0x20] sm:$0xff]
        %v188 = vld [vmem:[%s154 + $0x28] sm:$0xff]
        %v189 = vld [vmem:[%s154 + $0x30] sm:$0xff]
        %v190 = vld [vmem:[%s154 + $0x38] sm:$0xff]
        %v191 = vld [vmem:[%s154 + $0x40] sm:$0xff]
        %v192 = vld [vmem:[%s154 + $0x48] sm:$0xff]
        %v193 = vld [vmem:[%s154 + $0x50] sm:$0xff]
        %v194 = vld [vmem:[%s154 + $0x58] sm:$0xff]
        %v195 = vld [vmem:[%s154 + $0x60] sm:$0xff]
        %v196 = vld [vmem:[%s154 + $0x68] sm:$0xff]
        %v197 = vld [vmem:[%s154 + $0x70] sm:$0xff]
        %v198 = vld [vmem:[%s154 + $0x78] sm:$0xff]
        %v199 = vld [vmem:[%s154 + $0x80] sm:$0xff]
        %v200 = vld [vmem:[%s154 + $0x88] sm:$0xff]
        %v201 = vld [vmem:[%s154 + $0x90] sm:$0xff]
        %v202 = vld [vmem:[%s154 + $0x98] sm:$0xff]
        %v203 = vld [vmem:[%s154 + $0xa0] sm:$0xff]
        %v204 = vld [vmem:[%s154 + $0xa8] sm:$0xff]
        %v205 = vld [vmem:[%s154 + $0xb0] sm:$0xff]
        %v206 = vld [vmem:[%s154 + $0xb8] sm:$0xff]
        %v207 = vld [vmem:[%s154 + $0xc0] sm:$0xff]
        %v208 = vld [vmem:[%s154 + $0xc8] sm:$0xff]
        %v209 = vld [vmem:[%s154 + $0xd0] sm:$0xff]
        %v210 = vld [vmem:[%s154 + $0xd8] sm:$0xff]
        %v211 = vld [vmem:[%s154 + $0xe0] sm:$0xff]
        %v212 = vld [vmem:[%s154 + $0xe8] sm:$0xff]
        %v213 = vld [vmem:[%s154 + $0xf0] sm:$0xff]
        %v214 = vld [vmem:[%s154 + $0xf8] sm:$0xff]
        %v215 = vld [vmem:[#allocation5] sm:$0xff]
        %v216 = vld [vmem:[#allocation5 + $0x8] sm:$0xff]
        %v217 = vld [vmem:[#allocation5 + $0x10] sm:$0xff]
        %v218 = vld [vmem:[#allocation5 + $0x18] sm:$0xff]
        %v219 = vld [vmem:[#allocation5 + $0x20] sm:$0xff]
        %v220 = vld [vmem:[#allocation5 + $0x28] sm:$0xff]
        %v221 = vld [vmem:[#allocation5 + $0x30] sm:$0xff]
        %v222 = vld [vmem:[#allocation5 + $0x38] sm:$0xff]
        %v223 = vld [vmem:[#allocation5 + $0x40] sm:$0xff]
        %v224 = vld [vmem:[#allocation5 + $0x48] sm:$0xff]
        %v225 = vld [vmem:[#allocation5 + $0x50] sm:$0xff]
        %v226 = vld [vmem:[#allocation5 + $0x58] sm:$0xff]
        %v227 = vld [vmem:[#allocation5 + $0x60] sm:$0xff]
        %v228 = vld [vmem:[#allocation5 + $0x68] sm:$0xff]
        %v229 = vld [vmem:[#allocation5 + $0x70] sm:$0xff]
        %v230 = vld [vmem:[#allocation5 + $0x78] sm:$0xff]
        %231 = vmatpush.msra.mxu0 %v230
        %232 = vmatpush.msra.mxu0 %v229
        %233 = vmatpush.msra.mxu0 %v228
        %234 = vmatpush.msra.mxu0 %v227
        %235 = vmatpush.msra.mxu0 %v226
        %236 = vmatpush.msra.mxu0 %v225
        %237 = vmatpush.msra.mxu0 %v224
        %238 = vmatpush.msra.mxu0 %v223
        %239 = vmatpush.msra.mxu0 %v222
        %240 = vmatpush.msra.mxu0 %v221
        %241 = vmatpush.msra.mxu0 %v220
        %242 = vmatpush.msra.mxu0 %v219
        %243 = vmatpush.msra.mxu0 %v218
        %244 = vmatpush.msra.mxu0 %v217
        %245 = vmatpush.msra.mxu0 %v216
        %246 = vmatpush.msra.mxu0 %v215
        %247 = vmatmul.f32.gmra.mxu0 %v183
        %v248 = vpop.f32.mrf.mxu0
        %v249 = vadd.f32 0.0, %v248
        %250 = vmatmul.f32.gmra.mxu0 %v184
        %v251 = vpop.f32.mrf.mxu0
        %v252 = vadd.f32 0.0, %v251
        %253 = vmatmul.f32.gmra.mxu0 %v185
        %v254 = vpop.f32.mrf.mxu0
        %v255 = vadd.f32 0.0, %v254
        %256 = vmatmul.f32.gmra.mxu0 %v186
        %v257 = vpop.f32.mrf.mxu0
        %v258 = vadd.f32 0.0, %v257
        %259 = vmatmul.f32.gmra.mxu0 %v187
        %v260 = vpop.f32.mrf.mxu0
        %v261 = vadd.f32 0.0, %v260
        %262 = vmatmul.f32.gmra.mxu0 %v188
        %v263 = vpop.f32.mrf.mxu0
        %v264 = vadd.f32 0.0, %v263
        %265 = vmatmul.f32.gmra.mxu0 %v189
        %v266 = vpop.f32.mrf.mxu0
        %v267 = vadd.f32 0.0, %v266
        %268 = vmatmul.f32.gmra.mxu0 %v190
        %v269 = vpop.f32.mrf.mxu0
        %v270 = vadd.f32 0.0, %v269
        %271 = vmatmul.f32.gmra.mxu0 %v191
        %v272 = vpop.f32.mrf.mxu0
        %v273 = vadd.f32 0.0, %v272
        %274 = vmatmul.f32.gmra.mxu0 %v192
        %v275 = vpop.f32.mrf.mxu0
        %v276 = vadd.f32 0.0, %v275
        %277 = vmatmul.f32.gmra.mxu0 %v193
        %v278 = vpop.f32.mrf.mxu0
        %v279 = vadd.f32 0.0, %v278
        %280 = vmatmul.f32.gmra.mxu0 %v194
        %v281 = vpop.f32.mrf.mxu0
        %v282 = vadd.f32 0.0, %v281
        %283 = vmatmul.f32.gmra.mxu0 %v195
        %v284 = vpop.f32.mrf.mxu0
        %v285 = vadd.f32 0.0, %v284
        %286 = vmatmul.f32.gmra.mxu0 %v196
        %v287 = vpop.f32.mrf.mxu0
        %v288 = vadd.f32 0.0, %v287
        %289 = vmatmul.f32.gmra.mxu0 %v197
        %v290 = vpop.f32.mrf.mxu0
        %v291 = vadd.f32 0.0, %v290
        %292 = vmatmul.f32.gmra.mxu0 %v198
        %v293 = vpop.f32.mrf.mxu0
        %v294 = vadd.f32 0.0, %v293
        %295 = vmatmul.f32.gmra.mxu0 %v199
        %v296 = vpop.f32.mrf.mxu0
        %v297 = vadd.f32 0.0, %v296
        %298 = vmatmul.f32.gmra.mxu0 %v200
        %v299 = vpop.f32.mrf.mxu0
        %v300 = vadd.f32 0.0, %v299
        %301 = vmatmul.f32.gmra.mxu0 %v201
        %v302 = vpop.f32.mrf.mxu0
        %v303 = vadd.f32 0.0, %v302
        %304 = vmatmul.f32.gmra.mxu0 %v202
        %v305 = vpop.f32.mrf.mxu0
        %v306 = vadd.f32 0.0, %v305
        %307 = vmatmul.f32.gmra.mxu0 %v203
        %v308 = vpop.f32.mrf.mxu0
        %v309 = vadd.f32 0.0, %v308
        %310 = vmatmul.f32.gmra.mxu0 %v204
        %v311 = vpop.f32.mrf.mxu0
        %v312 = vadd.f32 0.0, %v311
        %313 = vmatmul.f32.gmra.mxu0 %v205
        %v314 = vpop.f32.mrf.mxu0
        %v315 = vadd.f32 0.0, %v314
        %316 = vmatmul.f32.gmra.mxu0 %v206
        %v317 = vpop.f32.mrf.mxu0
        %v318 = vadd.f32 0.0, %v317
        %319 = vmatmul.f32.gmra.mxu0 %v207
        %v320 = vpop.f32.mrf.mxu0
        %v321 = vadd.f32 0.0, %v320
        %322 = vmatmul.f32.gmra.mxu0 %v208
        %v323 = vpop.f32.mrf.mxu0
        %v324 = vadd.f32 0.0, %v323
        %325 = vmatmul.f32.gmra.mxu0 %v209
        %v326 = vpop.f32.mrf.mxu0
        %v327 = vadd.f32 0.0, %v326
        %328 = vmatmul.f32.gmra.mxu0 %v210
        %v329 = vpop.f32.mrf.mxu0
        %v330 = vadd.f32 0.0, %v329
        %331 = vmatmul.f32.gmra.mxu0 %v211
        %v332 = vpop.f32.mrf.mxu0
        %v333 = vadd.f32 0.0, %v332
        %334 = vmatmul.f32.gmra.mxu0 %v212
        %v335 = vpop.f32.mrf.mxu0
        %v336 = vadd.f32 0.0, %v335
        %337 = vmatmul.f32.gmra.mxu0 %v213
        %v338 = vpop.f32.mrf.mxu0
        %v339 = vadd.f32 0.0, %v338
        %340 = vmatmul.f32.gmra.mxu0 %v214
        %v341 = vpop.f32.mrf.mxu0
        %v342 = vadd.f32 0.0, %v341
        %343 = vdwg.mxu0
        %v344 = vpack.c.bf16 %v249, %v249
        %v345 = vpack.c.bf16 %v252, %v252
        %v346 = vpack.c.bf16 %v255, %v255
        %v347 = vpack.c.bf16 %v258, %v258
        %v348 = vpack.c.bf16 %v261, %v261
        %v349 = vpack.c.bf16 %v264, %v264
        %v350 = vpack.c.bf16 %v267, %v267
        %v351 = vpack.c.bf16 %v270, %v270
        %v352 = vpack.c.bf16 %v273, %v273
        %v353 = vpack.c.bf16 %v276, %v276
        %v354 = vpack.c.bf16 %v279, %v279
        %v355 = vpack.c.bf16 %v282, %v282
        %v356 = vpack.c.bf16 %v285, %v285
        %v357 = vpack.c.bf16 %v288, %v288
        %v358 = vpack.c.bf16 %v291, %v291
        %v359 = vpack.c.bf16 %v294, %v294
        %v360 = vpack.c.bf16 %v297, %v297
        %v361 = vpack.c.bf16 %v300, %v300
        %v362 = vpack.c.bf16 %v303, %v303
        %v363 = vpack.c.bf16 %v306, %v306
        %v364 = vpack.c.bf16 %v309, %v309
        %v365 = vpack.c.bf16 %v312, %v312
        %v366 = vpack.c.bf16 %v315, %v315
        %v367 = vpack.c.bf16 %v318, %v318
        %v368 = vpack.c.bf16 %v321, %v321
        %v369 = vpack.c.bf16 %v324, %v324
        %v370 = vpack.c.bf16 %v327, %v327
        %v371 = vpack.c.bf16 %v330, %v330
        %v372 = vpack.c.bf16 %v333, %v333
        %v373 = vpack.c.bf16 %v336, %v336
        %v374 = vpack.c.bf16 %v339, %v339
        %v375 = vpack.c.bf16 %v342, %v342
        %376 = vst [vmem:[%s180] sm:$0xf] %v344
        %377 = vst [vmem:[%s180 + $0x4] sm:$0xf] %v345
        %378 = vst [vmem:[%s180 + $0x8] sm:$0xf] %v346
        %379 = vst [vmem:[%s180 + $0xc] sm:$0xf] %v347
        %380 = vst [vmem:[%s180 + $0x10] sm:$0xf] %v348
        %381 = vst [vmem:[%s180 + $0x14] sm:$0xf] %v349
        %382 = vst [vmem:[%s180 + $0x18] sm:$0xf] %v350
        %383 = vst [vmem:[%s180 + $0x1c] sm:$0xf] %v351
        %384 = vst [vmem:[%s180 + $0x20] sm:$0xf] %v352
        %385 = vst [vmem:[%s180 + $0x24] sm:$0xf] %v353
        %386 = vst [vmem:[%s180 + $0x28] sm:$0xf] %v354
        %387 = vst [vmem:[%s180 + $0x2c] sm:$0xf] %v355
        %388 = vst [vmem:[%s180 + $0x30] sm:$0xf] %v356
        %389 = vst [vmem:[%s180 + $0x34] sm:$0xf] %v357
        %390 = vst [vmem:[%s180 + $0x38] sm:$0xf] %v358
        %391 = vst [vmem:[%s180 + $0x3c] sm:$0xf] %v359
        %392 = vst [vmem:[%s180 + $0x40] sm:$0xf] %v360
        %393 = vst [vmem:[%s180 + $0x44] sm:$0xf] %v361
        %394 = vst [vmem:[%s180 + $0x48] sm:$0xf] %v362
        %395 = vst [vmem:[%s180 + $0x4c] sm:$0xf] %v363
        %396 = vst [vmem:[%s180 + $0x50] sm:$0xf] %v364
        %397 = vst [vmem:[%s180 + $0x54] sm:$0xf] %v365
        %398 = vst [vmem:[%s180 + $0x58] sm:$0xf] %v366
        %399 = vst [vmem:[%s180 + $0x5c] sm:$0xf] %v367
        %400 = vst [vmem:[%s180 + $0x60] sm:$0xf] %v368
        %401 = vst [vmem:[%s180 + $0x64] sm:$0xf] %v369
        %402 = vst [vmem:[%s180 + $0x68] sm:$0xf] %v370
        %403 = vst [vmem:[%s180 + $0x6c] sm:$0xf] %v371
        %404 = vst [vmem:[%s180 + $0x70] sm:$0xf] %v372
        %405 = vst [vmem:[%s180 + $0x74] sm:$0xf] %v373
        %406 = vst [vmem:[%s180 + $0x78] sm:$0xf] %v374
        %407 = vst [vmem:[%s180 + $0x7c] sm:$0xf] %v375
        %s408 = sand.u32 %s75, 1
        %s409 = scalar_lea.sflag [#allocation4], %s408
        %s410 = sand.u32 %s75, 1
        %s411 = smul.addr %s410, 128
        %s412 = scalar_lea.vmem [#allocation7], %s411
        // Predicated region
        $region37: #{tpu_custom_call.1} parent=27 // pred_check
          %p413 = pneg %p85
        $region38: #{tpu_custom_call.1} parent=27 // pred_check_branch
          %415 = sbr.rel (%p413) target = $region40
        $region39: #{tpu_custom_call.1} parent=27 // pred_region
          %s416 = smul.u32 32, %s20
          %418 = vsyncadd %s409, 0
          %s419 = smul.addr %s416, 4
          %s420 = scalar_lea.hbm %s2, %s419
          %s421 = sshll.u32 %s412, 4
          %s422 = int_to_ptr.vmem [resolvable:$true] %s421
          %s423 = sshll.u32 %s420, 4
          %s424 = int_to_ptr.hbm [resolvable:$true] %s423
          %429 = dma.vmem_to_hbm [thread:$0]  %s422, 2048, %s424, %s409, 64, 64, 4
        $region40: #{tpu_custom_call.1} parent=27 // pred_fallthru
          _
      $region28: #{tpu_custom_call.1} parent=5 // pred_fallthru
        _
      %p430 = scmp.le.s32.totalorder 2, %s15
      // Predicated region
      $region41: #{tpu_custom_call.1} parent=5 // pred_check
        %p431 = pneg %p430
      $region42: #{tpu_custom_call.1} parent=5 // pred_check_branch
        %433 = sbr.rel (%p431) target = $region44
      $region43: #{tpu_custom_call.1} parent=5 // pred_region
        %s434 = ssub.s32 %s15, 2
        // Predicated region
        $region45: #{tpu_custom_call.1} parent=43 // pred_check
          %p435 = pneg %p91
        $region46: #{tpu_custom_call.1} parent=43 // pred_check_branch
          %437 = sbr.rel (%p435) target = $region48
        $region47: #{tpu_custom_call.1} parent=43 // pred_region
          %s438 = sand.u32 %s76, 1
          %s439 = scalar_lea.sflag [#allocation4], %s438
          %s440 = sand.u32 %s76, 1
          %s441 = smul.addr %s440, 128
          %s442 = scalar_lea.vmem [#allocation7], %s441
          %444 = dma.done %s439, 2048
        $region48: #{tpu_custom_call.1} parent=43 // pred_fallthru
          _
      $region44: #{tpu_custom_call.1} parent=5 // pred_fallthru
        _
    $region6: #{tpu_custom_call.1} parent=1 // loop_footer
      %s19 = sadd.s32 1, %s15
    $region7: #{tpu_custom_call.1} parent=1 // loop_footer_branch
      %14 = sbr.rel target = $region3
    $region8: #{tpu_custom_call.1} parent=1 // loop_exit
      _
    %445 = vsyncpa [#allocation3], 1
    %s446 = scalar_lea.sflag [#allocation3], 1
    %447 = vsyncpa %s446, 1
    %448 = vsyncpa [#allocation6], 1
    %449 = vsyncpa [#allocation4], 1
    %s450 = scalar_lea.sflag [#allocation4], 1
    %451 = vsyncpa %s450, 1

</llo_original>
